<compile_context>
chip_gen: v7x
topology: tpu7x:2x2x1
jax: 0.10.0
libtpu: 0.0.40
codegen_flags: <defaults>
</compile_context>

<pallas_src>
import functools

import jax
import jax.numpy as jnp
from jax.experimental import pallas as pl
from jax.experimental.pallas import tpu as pltpu


def _round_up(v, m):
    return ((v + m - 1) // m) * m


def _focal_loss_kernel(x_ref, t_ref, o_ref, *, c, gamma, hw, tile_hw):
    """One grid step: a (1, C, tile_hw) logits slab with pixels lane-dense."""
    i = pl.program_id(1)  # position along the pixel-tile (reduction) axis

    @pl.when(i == 0)
    def _init():
        o_ref[...] = jnp.zeros_like(o_ref)

    t = t_ref[...]  # (1, 1, tile_hw) int32 class ids

    if c <= 32:
        # Fully lane-dense path, unrolled over the (small, compile-time) class
        # axis: every op works on full 128-lane (1, 1, tile_hw) slabs; the
        # softmax max/sum and the target "gather" are C-step compare/add/select
        # chains instead of cross-lane/sublane reductions.
        rows = [x_ref[:, pl.ds(k, 1), :].astype(jnp.float32) for k in range(c)]
        m = rows[0]
        for k in range(1, c):
            m = jnp.maximum(m, rows[k])
        denom = jnp.exp(rows[0] - m)
        for k in range(1, c):
            denom = denom + jnp.exp(rows[k] - m)
        x_t = rows[0]
        for k in range(1, c):
            x_t = jnp.where(t == k, rows[k], x_t)
    else:
        # Many-class fallback: small sublane-axis reductions, still lane-dense.
        x = x_ref[...].astype(jnp.float32)                     # (1, C, tile_hw)
        m = jnp.max(x, axis=1, keepdims=True)
        denom = jnp.sum(jnp.exp(x - m), axis=1, keepdims=True)
        onehot = jax.lax.broadcasted_iota(jnp.int32, x.shape, 1) == t
        x_t = jnp.sum(jnp.where(onehot, x, 0.0), axis=1, keepdims=True)

    log_pt = (x_t - m) - jnp.log(denom)          # log softmax @ target, <= 0
    pt = jnp.exp(log_pt)                          # softmax prob @ target
    q = jnp.maximum(1.0 - pt, 0.0)                # clamp: avoid pow(<0) NaN

    g_int = int(round(gamma))
    if abs(gamma - g_int) < 1e-12 and 0 <= g_int <= 8:
        # integer gamma (common case y=2): plain VPU multiplies, no EUP pow chain
        if g_int == 0:
            focus = jnp.ones_like(q)
        else:
            focus = q
            for _ in range(g_int - 1):
                focus = focus * q
    else:
        focus = jnp.power(q, jnp.float32(gamma))

    contrib = focus * (-log_pt)                   # (1, 1, tile_hw)

    if hw % tile_hw != 0:
        # only emitted when the pixel axis was padded: zero out padded lanes
        lane = jax.lax.broadcasted_iota(jnp.int32, contrib.shape, 2)
        pix = i * tile_hw + lane
        contrib = jnp.where(pix < hw, contrib, 0.0)

    # lane-dense partial-sum accumulation into the resident output block;
    # the scalar reduce + alpha/(N*H*W) scale happen in the wrapper epilogue.
    o_ref[...] += contrib


def focal_loss(output_nchw, target_nhw, *, gamma=2.0, alpha=0.25, tile_hw=None):
    """output_nchw: (N, C, H, W) float logits; target_nhw: (N, H, W) int class ids."""
    n, c, h, w = output_nchw.shape
    hw = h * w

    # Native layout: free reshape only (no transpose). Pixels -> lane axis.
    x = output_nchw.reshape(n, c, hw)
    t = target_nhw.reshape(n, 1, hw).astype(jnp.int32)

    # Tile sizing: big lane-dense tiles (<= 4096 pixels) — a (C, 4096) f32 block
    # is tiny, far under every generation's VMEM limit (incl. v7x's 64 MiB).
    if tile_hw is None:
        tile_hw = min(_round_up(hw, 128), 4096)
    else:
        tile_hw = _round_up(int(tile_hw), 128)
    hw_pad = _round_up(hw, tile_hw)
    if hw_pad != hw:
        x = jnp.pad(x, ((0, 0), (0, 0), (0, hw_pad - hw)))
        t = jnp.pad(t, ((0, 0), (0, 0), (0, hw_pad - hw)))

    grid = (n, hw_pad // tile_hw)
    kernel = functools.partial(
        _focal_loss_kernel, c=c, gamma=float(gamma), hw=hw, tile_hw=tile_hw)

    partials = pl.pallas_call(
        kernel,
        out_shape=jax.ShapeDtypeStruct((n, 1, tile_hw), jnp.float32),
        grid_spec=pltpu.PrefetchScalarGridSpec(
            num_scalar_prefetch=0,
            grid=grid,
            in_specs=[
                pl.BlockSpec((1, c, tile_hw), lambda b, i: (b, 0, i)),  # logits
                pl.BlockSpec((1, 1, tile_hw), lambda b, i: (b, 0, i)),  # targets
            ],
            out_specs=pl.BlockSpec((1, 1, tile_hw), lambda b, i: (b, 0, 0)),
        ),
        compiler_params=pltpu.CompilerParams(
            # batch axis parallel (v7x: 2 TensorCores), pixel-tile axis reduces
            dimension_semantics=("parallel", "arbitrary")),
    )(x, t)

    # Tiny XLA epilogue: cross-lane reduce of the per-batch lane-dense partials
    # and a single fused multiply by alpha / (N*H*W).
    return jnp.sum(partials) * jnp.float32(alpha / (n * hw))


def focal_loss_ref(output_nchw, target_nhw, *, gamma=2.0, alpha=0.25):
    """Pure-JAX reference matching the PyTorch forward."""
    logp = jax.nn.log_softmax(output_nchw.astype(jnp.float32), axis=1)
    prob = jnp.exp(logp)
    onehot = jax.nn.one_hot(target_nhw, output_nchw.shape[1], axis=1,
                            dtype=jnp.float32)
    pt = jnp.sum(prob * onehot, axis=1, keepdims=True)
    log_pt = jnp.sum(logp * onehot, axis=1, keepdims=True)
    weight_nll = alpha * jnp.power(1.0 - pt, gamma) * (-log_pt)
    return jnp.mean(weight_nll)


if __name__ == "__main__":
    # deterministic "configer": focal_loss.y = 2.0 (gamma), alpha fixed at 0.25
    GAMMA = 2.0

    key = jax.random.PRNGKey(0)
    k1, k2 = jax.random.split(key)
    N, C, H, W = 2, 4, 16, 16
    output = jax.random.normal(k1, (N, C, H, W), dtype=jnp.float32)
    target = jax.random.randint(k2, (N, H, W), 0, C, dtype=jnp.int32)

    loss = jax.block_until_ready(focal_loss(output, target, gamma=GAMMA))
    loss_ref = jax.block_until_ready(focal_loss_ref(output, target, gamma=GAMMA))

    assert jnp.allclose(loss, loss_ref, rtol=1e-5, atol=1e-6), (loss, loss_ref)
    print("KERNEL_OK")
</pallas_src>

<mosaic_0001>
module attributes {stable_mosaic.version = 11 : i64} {
  func.func @_focal_loss_kernel(%arg0: i32, %arg1: i32, %arg2: memref<1x4x256xf32, #tpu.memory_space<vmem>>, %arg3: memref<1x1x256xi32, #tpu.memory_space<vmem>>, %arg4: memref<1x1x256xf32, #tpu.memory_space<vmem>>) attributes {dimension_semantics = [#tpu.dimension_semantics<parallel>, #tpu.dimension_semantics<arbitrary>], iteration_bounds = array<i64: 2, 1>, scalar_prefetch = 0 : i64, scratch_operands = 0 : i64, tpu.core_type = #tpu.core_type<tc>, window_params = [{transform_indices = @transform_0, window_bounds = array<i64: 1, 4, 256>}, {transform_indices = @transform_1, window_bounds = array<i64: 1, 1, 256>}, {transform_indices = @transform_2, window_bounds = array<i64: 1, 1, 256>}]} {
    %c0_i32 = arith.constant 0 : i32
    %0 = arith.cmpi eq, %arg1, %c0_i32 : i32
    %1 = arith.extui %0 : i1 to i32
    %c0_i32_0 = arith.constant 0 : i32
    %2 = arith.cmpi ne, %1, %c0_i32_0 : i32
    scf.if %2 {
      %cst_20 = arith.constant 0.000000e+00 : f32
      %46 = vector.broadcast %cst_20 : f32 to vector<1x1x256xf32>
      %c0_21 = arith.constant 0 : index
      %c0_22 = arith.constant 0 : index
      %c0_23 = arith.constant 0 : index
      %47 = vector.load %arg4[%c0_21, %c0_22, %c0_23] : memref<1x1x256xf32, #tpu.memory_space<vmem>>, vector<1x1x256xf32>
      tpu.vector_store %arg4[%c0_21, %c0_22, %c0_23], %46 {strides = array<i32>} : memref<1x1x256xf32, #tpu.memory_space<vmem>>, vector<1x1x256xf32>,
    } else {
    }
    %c0 = arith.constant 0 : index
    %c0_1 = arith.constant 0 : index
    %c0_2 = arith.constant 0 : index
    %3 = vector.load %arg3[%c0, %c0_1, %c0_2] : memref<1x1x256xi32, #tpu.memory_space<vmem>>, vector<1x1x256xi32>
    %c0_3 = arith.constant 0 : index
    %c0_4 = arith.constant 0 : index
    %c0_5 = arith.constant 0 : index
    %4 = vector.load %arg2[%c0_3, %c0_4, %c0_5] : memref<1x4x256xf32, #tpu.memory_space<vmem>>, vector<1x1x256xf32>
    %c0_6 = arith.constant 0 : index
    %c1 = arith.constant 1 : index
    %c0_7 = arith.constant 0 : index
    %5 = vector.load %arg2[%c0_6, %c1, %c0_7] : memref<1x4x256xf32, #tpu.memory_space<vmem>>, vector<1x1x256xf32>
    %c0_8 = arith.constant 0 : index
    %c2 = arith.constant 2 : index
    %c0_9 = arith.constant 0 : index
    %6 = vector.load %arg2[%c0_8, %c2, %c0_9] : memref<1x4x256xf32, #tpu.memory_space<vmem>>, vector<1x1x256xf32>
    %c0_10 = arith.constant 0 : index
    %c3 = arith.constant 3 : index
    %c0_11 = arith.constant 0 : index
    %7 = vector.load %arg2[%c0_10, %c3, %c0_11] : memref<1x4x256xf32, #tpu.memory_space<vmem>>, vector<1x1x256xf32>
    %8 = arith.maximumf %4, %5 : vector<1x1x256xf32>
    %9 = arith.maximumf %8, %6 : vector<1x1x256xf32>
    %10 = arith.maximumf %9, %7 : vector<1x1x256xf32>
    %11 = arith.subf %4, %10 : vector<1x1x256xf32>
    %12 = math.exp %11 : vector<1x1x256xf32>
    %13 = arith.subf %5, %10 : vector<1x1x256xf32>
    %14 = math.exp %13 : vector<1x1x256xf32>
    %15 = arith.addf %12, %14 : vector<1x1x256xf32>
    %16 = arith.subf %6, %10 : vector<1x1x256xf32>
    %17 = math.exp %16 : vector<1x1x256xf32>
    %18 = arith.addf %15, %17 : vector<1x1x256xf32>
    %19 = arith.subf %7, %10 : vector<1x1x256xf32>
    %20 = math.exp %19 : vector<1x1x256xf32>
    %21 = arith.addf %18, %20 : vector<1x1x256xf32>
    %c1_i32 = arith.constant 1 : i32
    %22 = vector.broadcast %c1_i32 : i32 to vector<1x1x256xi32>
    %23 = arith.cmpi eq, %3, %22 : vector<1x1x256xi32>
    %24 = arith.select %23, %5, %4 : vector<1x1x256xi1>, vector<1x1x256xf32>
    %c2_i32 = arith.constant 2 : i32
    %25 = vector.broadcast %c2_i32 : i32 to vector<1x1x256xi32>
    %26 = arith.cmpi eq, %3, %25 : vector<1x1x256xi32>
    %27 = arith.select %26, %6, %24 : vector<1x1x256xi1>, vector<1x1x256xf32>
    %c3_i32 = arith.constant 3 : i32
    %28 = vector.broadcast %c3_i32 : i32 to vector<1x1x256xi32>
    %29 = arith.cmpi eq, %3, %28 : vector<1x1x256xi32>
    %30 = arith.select %29, %7, %27 : vector<1x1x256xi1>, vector<1x1x256xf32>
    %31 = arith.subf %30, %10 : vector<1x1x256xf32>
    %32 = math.log %21 : vector<1x1x256xf32>
    %33 = arith.subf %31, %32 : vector<1x1x256xf32>
    %34 = math.exp %33 : vector<1x1x256xf32>
    %cst = arith.constant 1.000000e+00 : f32
    %35 = vector.broadcast %cst : f32 to vector<1x1x256xf32>
    %36 = arith.subf %35, %34 : vector<1x1x256xf32>
    %cst_12 = arith.constant 0.000000e+00 : f32
    %37 = vector.broadcast %cst_12 : f32 to vector<1x1x256xf32>
    %38 = arith.maximumf %36, %37 : vector<1x1x256xf32>
    %39 = arith.mulf %38, %38 : vector<1x1x256xf32>
    %cst_13 = arith.constant 0.000000e+00 : f32
    %40 = vector.broadcast %cst_13 : f32 to vector<1x1x256xf32>
    %41 = arith.subf %40, %33 : vector<1x1x256xf32>
    %42 = arith.mulf %39, %41 : vector<1x1x256xf32>
    %c0_14 = arith.constant 0 : index
    %c0_15 = arith.constant 0 : index
    %c0_16 = arith.constant 0 : index
    %43 = vector.load %arg4[%c0_14, %c0_15, %c0_16] : memref<1x1x256xf32, #tpu.memory_space<vmem>>, vector<1x1x256xf32>
    %44 = arith.addf %43, %42 : vector<1x1x256xf32>
    %c0_17 = arith.constant 0 : index
    %c0_18 = arith.constant 0 : index
    %c0_19 = arith.constant 0 : index
    %45 = vector.load %arg4[%c0_17, %c0_18, %c0_19] : memref<1x1x256xf32, #tpu.memory_space<vmem>>, vector<1x1x256xf32>
    tpu.vector_store %arg4[%c0_17, %c0_18, %c0_19], %44 {strides = array<i32>} : memref<1x1x256xf32, #tpu.memory_space<vmem>>, vector<1x1x256xf32>,
    return
  }
  func.func @transform_0(%arg0: i32, %arg1: i32) -> (i32, i32, i32) {
    %c0_i32 = arith.constant 0 : i32
    %c0_i32_0 = arith.constant 0 : i32
    return %arg0, %c0_i32, %arg1 : i32, i32, i32
  }
  func.func @transform_1(%arg0: i32, %arg1: i32) -> (i32, i32, i32) {
    %c0_i32 = arith.constant 0 : i32
    %c0_i32_0 = arith.constant 0 : i32
    return %arg0, %c0_i32, %arg1 : i32, i32, i32
  }
  func.func @transform_2(%arg0: i32, %arg1: i32) -> (i32, i32, i32) {
    %c0_i32 = arith.constant 0 : i32
    %c0_i32_0 = arith.constant 0 : i32
    %c0_i32_1 = arith.constant 0 : i32
    return %arg0, %c0_i32, %c0_i32_0 : i32, i32, i32
  }
}

</mosaic_0001>

<llo_original>
// kernel: tpu_custom_call.1
$region0: #{tpu_custom_call.1}
  #allocation0 [shape = 'u32[]', space=smem, size = 0x4, offset = 0x4, fixed_abs, tag = 'smem constant byte address 0x4 - core index']
  #allocation1 [shape = 'u32[144,128]{1,0:T(1,128)}', space=vmem, size = 0x12000, scoped, tag = 'internal scratch']
  %s0 = inlined_call_operand.hbm [shape: f32[2,4,256], index: 0, kind: input, shape index: {}]
  %s1 = inlined_call_operand.hbm [shape: s32[2,1,256], index: 1, kind: input, shape index: {}]
  %s2 = inlined_call_operand.hbm [shape: f32[2,1,256], index: 2, kind: output, shape index: {}]
  %s3 = sld [smem:[#allocation0]]
  $region53: #{tpu_custom_call.1} parent=0
    _
  %s5 = ssub.s32 1, %s3
  %s6 = scalar_select 0, %s5, %s3
  $region1: #{tpu_custom_call.1} parent=0
    #allocation2 [shape = 'u8[8192]{0}', space=vmem, size = 0x2000, scoped, tag = 'input window, operand 0']
    #allocation3 [shape = 's32[2]{0}', space=sflag, size = 0x8, scoped, tag = 'scoped memory for tpu_custom_call.1']
    #allocation4 [shape = 's32[2]{0}', space=sflag, size = 0x8, scoped, tag = 'scoped memory for tpu_custom_call.1']
    #allocation5 [shape = 'u8[2048]{0}', space=vmem, size = 0x800, scoped, tag = 'input window, operand 1']
    #allocation6 [shape = 's32[2]{0}', space=sflag, size = 0x8, scoped, tag = 'scoped memory for tpu_custom_call.1']
    #allocation7 [shape = 'u8[2048]{0}', space=vmem, size = 0x800, scoped, tag = 'output window, operand 0']
    %7 = vsyncpa [#allocation3], 0
    %s8 = scalar_lea.sflag [#allocation3], 1
    %9 = vsyncpa %s8, 0
    %10 = vsyncpa [#allocation6], 0
    %s11 = scalar_lea.sflag [#allocation6], 1
    %12 = vsyncpa %s11, 0
    %13 = vsyncpa [#allocation4], 0
    %s14 = scalar_lea.sflag [#allocation4], 1
    %15 = vsyncpa %s14, 0
    loop: start=0, step=1, limit=4
    $region2: #{tpu_custom_call.1} parent=1 // loop_pre_header
      _
    $region3: #{tpu_custom_call.1} parent=1 // loop_header
      %s17 = sphi 0, %s21
      %p18 = scmp.ge.s32.totalorder %s17, 4
      %s24 = sphi 0, %s36
      %s25 = sphi 0, %s32
      %s26 = sphi 0, %s24
      %s27 = sphi 0, %s25
      %s28 = sphi 0, %s26
      %s29 = sphi 0, %s27
      %s41 = sphi 0, %s43
      %s44 = sphi 0, %s41
      %s45 = sphi 0, %s44
      %s61 = sphi 0, %s45
      %s69 = sphi 0, %s71
      %s72 = sphi 0, %s69
      %s73 = sphi 0, %s72
      %s89 = sphi 0, %s73
      %s95 = sphi 0, %s97
      %s98 = sphi 0, %s95
      %s99 = sphi 0, %s98
      %s115 = sphi 0, %s99
    $region4: #{tpu_custom_call.1} parent=1 // loop_header_branch
      %20 = sbr.rel (%p18) target = $region8
    $region5: #{tpu_custom_call.1} parent=1 // loop_body
      %s22 = ssub.s32 %s17, 1
      %s23 = ssub.s32 %s17, 2
      %s30 = sadd.s32 1, %s25
      %p31 = scmp.ge.s32.totalorder %s30, 1
      %s32 = scalar_select %p31, 0, %s30
      %s33 = sadd.s32 1, %s24
      %s34 = scalar_select %p31, %s33, %s24
      %p35 = scmp.ge.s32.totalorder %s34, 2
      %s36 = scalar_select %p35, 0, %s34
      %s37 = ssub.s32 %s24, %s36
      %s38 = ssub.s32 %s25, %s32
      %s39 = sor.u32 %s37, %s38
      %p40 = scmp.eq.s32.totalorder %s39, 0
      %s42 = sadd.s32 %s41, 1
      %s43 = scalar_select %p40, %s41, %s42
      %p46 = pneg %p40
      %p47 = scmp.eq.s32.totalorder %s17, 1
      %p48 = por %p46, %p47
      %p49 = scmp.ne.s32.totalorder %s41, %s44
      %p50 = scmp.eq.s32.totalorder %s17, 0
      %p51 = por %p49, %p50
      %p52 = scmp.ne.s32.totalorder %s41, %s44
      %p53 = scmp.eq.s32.totalorder %s22, 1
      %p54 = por %p52, %p53
      %p55 = scmp.ne.s32.totalorder %s44, %s45
      %p56 = scmp.eq.s32.totalorder %s22, 0
      %p57 = por %p55, %p56
      %p58 = scmp.ne.s32.totalorder %s44, %s45
      %p59 = scmp.eq.s32.totalorder %s23, 1
      %p60 = por %p58, %p59
      %p62 = scmp.ne.s32.totalorder %s45, %s61
      %p63 = scmp.eq.s32.totalorder %s23, 0
      %p64 = por %p62, %p63
      %s65 = ssub.s32 %s24, %s36
      %s66 = ssub.s32 %s25, %s32
      %s67 = sor.u32 %s65, %s66
      %p68 = scmp.eq.s32.totalorder %s67, 0
      %s70 = sadd.s32 %s69, 1
      %s71 = scalar_select %p68, %s69, %s70
      %p74 = pneg %p68
      %p75 = scmp.eq.s32.totalorder %s17, 1
      %p76 = por %p74, %p75
      %p77 = scmp.ne.s32.totalorder %s69, %s72
      %p78 = scmp.eq.s32.totalorder %s17, 0
      %p79 = por %p77, %p78
      %p80 = scmp.ne.s32.totalorder %s69, %s72
      %p81 = scmp.eq.s32.totalorder %s22, 1
      %p82 = por %p80, %p81
      %p83 = scmp.ne.s32.totalorder %s72, %s73
      %p84 = scmp.eq.s32.totalorder %s22, 0
      %p85 = por %p83, %p84
      %p86 = scmp.ne.s32.totalorder %s72, %s73
      %p87 = scmp.eq.s32.totalorder %s23, 1
      %p88 = por %p86, %p87
      %p90 = scmp.ne.s32.totalorder %s73, %s89
      %p91 = scmp.eq.s32.totalorder %s23, 0
      %p92 = por %p90, %p91
      %s93 = ssub.s32 %s24, %s36
      %p94 = scmp.eq.s32.totalorder %s93, 0
      %s96 = sadd.s32 %s95, 1
      %s97 = scalar_select %p94, %s95, %s96
      %p100 = pneg %p94
      %p101 = scmp.eq.s32.totalorder %s17, 1
      %p102 = por %p100, %p101
      %p103 = scmp.ne.s32.totalorder %s95, %s98
      %p104 = scmp.eq.s32.totalorder %s17, 0
      %p105 = por %p103, %p104
      %p106 = scmp.ne.s32.totalorder %s95, %s98
      %p107 = scmp.eq.s32.totalorder %s22, 1
      %p108 = por %p106, %p107
      %p109 = scmp.ne.s32.totalorder %s98, %s99
      %p110 = scmp.eq.s32.totalorder %s22, 0
      %p111 = por %p109, %p110
      %p112 = scmp.ne.s32.totalorder %s98, %s99
      %p113 = scmp.eq.s32.totalorder %s23, 1
      %p114 = por %p112, %p113
      %p116 = scmp.ne.s32.totalorder %s99, %s115
      %p117 = scmp.eq.s32.totalorder %s23, 0
      %p118 = por %p116, %p117
      %p119 = scmp.le.s32.totalorder 1, %s17
      %p120 = scmp.lt.s32.totalorder %s17, 3
      %p121 = pnand %p119, %p120
      %p122 = pneg %p121
      // Predicated region
      $region9: #{tpu_custom_call.1} parent=5 // pred_check
        _
      $region10: #{tpu_custom_call.1} parent=5 // pred_check_branch
        %124 = sbr.rel (%p121) target = $region12
      $region11: #{tpu_custom_call.1} parent=5 // pred_region
        %s125 = ssub.s32 %s17, 1
      $region12: #{tpu_custom_call.1} parent=5 // pred_fallthru
        _
      %p126 = scmp.lt.s32.totalorder %s17, 2
      // Predicated region
      $region13: #{tpu_custom_call.1} parent=5 // pred_check
        %p127 = pneg %p126
      $region14: #{tpu_custom_call.1} parent=5 // pred_check_branch
        %129 = sbr.rel (%p127) target = $region16
      $region15: #{tpu_custom_call.1} parent=5 // pred_region
        // Predicated region
        $region17: #{tpu_custom_call.1} parent=15 // pred_check
          %p130 = pneg %p51
        $region18: #{tpu_custom_call.1} parent=15 // pred_check_branch
          %132 = sbr.rel (%p130) target = $region20
        $region19: #{tpu_custom_call.1} parent=15 // pred_region
          %s133 = sand.u32 %s41, 1
          %s134 = scalar_lea.sflag [#allocation3], %s133
          %s135 = sand.u32 %s41, 1
          %s136 = smul.addr %s135, 8
          %s137 = scalar_lea.vmem [#allocation2], %s136
          %s138 = smul.u32 2, %s25
          %s140 = ssub.s32 128, 128
          %141 = vsyncadd %s134, %s140
          %s142 = smul.addr %s24, 2
          %s143 = sadd.s32 %s138, %s142
          %s144 = smul.addr %s143, 64
          %s145 = scalar_lea.hbm %s0, %s144
          %s147 = sshll.u32 %s137, 4
          %s148 = int_to_ptr.vmem [resolvable:$true] %s147
          %150 = dma.hbm_to_vmem [thread:$0]  %s145, 128, %s148, %s134
        $region20: #{tpu_custom_call.1} parent=15 // pred_fallthru
          _
        // Predicated region
        $region21: #{tpu_custom_call.1} parent=15 // pred_check
          %p151 = pneg %p79
        $region22: #{tpu_custom_call.1} parent=15 // pred_check_branch
          %153 = sbr.rel (%p151) target = $region24
        $region23: #{tpu_custom_call.1} parent=15 // pred_region
          %s154 = sand.u32 %s69, 1
          %s155 = scalar_lea.sflag [#allocation6], %s154
          %s156 = sand.u32 %s69, 1
          %s157 = smul.addr %s156, 2
          %s158 = scalar_lea.vmem [#allocation5], %s157
          %s159 = smul.u32 2, %s25
          %s161 = ssub.s32 32, 32
          %162 = vsyncadd %s155, %s161
          %s163 = smul.addr %s24, 2
          %s164 = sadd.s32 %s159, %s163
          %s165 = smul.addr %s164, 16
          %s166 = scalar_lea.hbm %s1, %s165
          %s168 = sshll.u32 %s158, 4
          %s169 = int_to_ptr.vmem [resolvable:$true] %s168
          %171 = dma.hbm_to_vmem [thread:$0]  %s166, 32, %s169, %s155
        $region24: #{tpu_custom_call.1} parent=15 // pred_fallthru
          _
      $region16: #{tpu_custom_call.1} parent=5 // pred_fallthru
        _
      %p172 = scmp.le.s32.totalorder 1, %s17
      %p173 = scmp.lt.s32.totalorder %s17, 3
      %p174 = pnand %p172, %p173
      %p175 = pneg %p174
      // Predicated region
      $region25: #{tpu_custom_call.1} parent=5 // pred_check
        _
      $region26: #{tpu_custom_call.1} parent=5 // pred_check_branch
        %177 = sbr.rel (%p174) target = $region28
      $region27: #{tpu_custom_call.1} parent=5 // pred_region
        %s178 = ssub.s32 %s17, 1
        %s179 = sand.u32 %s44, 1
        %s180 = scalar_lea.sflag [#allocation3], %s179
        %s181 = sand.u32 %s44, 1
        %s182 = smul.addr %s181, 8
        %s183 = scalar_lea.vmem [#allocation2], %s182
        // Predicated region
        $region29: #{tpu_custom_call.1} parent=27 // pred_check
          %p184 = pneg %p57
        $region30: #{tpu_custom_call.1} parent=27 // pred_check_branch
          %186 = sbr.rel (%p184) target = $region32
        $region31: #{tpu_custom_call.1} parent=27 // pred_region
          %187 = dma.done %s180, 128
        $region32: #{tpu_custom_call.1} parent=27 // pred_fallthru
          _
        %s188 = sand.u32 %s72, 1
        %s189 = scalar_lea.sflag [#allocation6], %s188
        %s190 = sand.u32 %s72, 1
        %s191 = smul.addr %s190, 2
        %s192 = scalar_lea.vmem [#allocation5], %s191
        // Predicated region
        $region33: #{tpu_custom_call.1} parent=27 // pred_check
          %p193 = pneg %p85
        $region34: #{tpu_custom_call.1} parent=27 // pred_check_branch
          %195 = sbr.rel (%p193) target = $region36
        $region35: #{tpu_custom_call.1} parent=27 // pred_region
          %196 = dma.done %s189, 32
        $region36: #{tpu_custom_call.1} parent=27 // pred_fallthru
          _
        %s197 = sand.u32 %s44, 1
        %s198 = scalar_lea.sflag [#allocation3], %s197
        %s199 = sand.u32 %s44, 1
        %s200 = smul.addr %s199, 8
        %s201 = scalar_lea.vmem [#allocation2], %s200
        %p202 = pneg %p57
        %p203 = pneg %p54
        %s204 = sand.u32 %s72, 1
        %s205 = scalar_lea.sflag [#allocation6], %s204
        %s206 = sand.u32 %s72, 1
        %s207 = smul.addr %s206, 2
        %s208 = scalar_lea.vmem [#allocation5], %s207
        %p209 = pneg %p85
        %p210 = pneg %p82
        %p211 = pneg %p111
        %p212 = pneg %p108
        %s213 = sand.u32 %s98, 1
        %s214 = scalar_lea.sflag [#allocation4], %s213
        %s215 = sand.u32 %s98, 1
        %s216 = smul.addr %s215, 2
        %s217 = scalar_lea.vmem [#allocation7], %s216
        %s218 = smul.u32 2, %s27
        %s219 = smul.u32 2, %s27
        %p220 = scmp.eq.s32.totalorder %s27, 0
        // Predicated region
        $region37: #{tpu_custom_call.1} parent=27 // pred_check
          %p221 = pneg %p220
        $region38: #{tpu_custom_call.1} parent=27 // pred_check_branch
          %223 = sbr.rel (%p221) target = $region40
        $region39: #{tpu_custom_call.1} parent=27 // pred_region
          %v224 = vlaneseq
          %vm225 = vcmp.ge.s32.totalorder %v224, 0
          %vm226 = vcmp.lt.s32.totalorder %v224, 256
          %vm227 = vmand %vm225, %vm226
          %228 = vst.msk [vmem:[%s217] sm:$0x3] %vm227, 0.0
        $region40: #{tpu_custom_call.1} parent=27 // pred_fallthru
          _
        %v229 = vld [vmem:[%s192] sm:$0x3]
        %v230 = vld [vmem:[%s183] ss:$4 sm:$0x3]
        %s231 = scalar_lea.vmem %s183, 1 [#allocation2]
        %v232 = vld [vmem:[%s231] ss:$4 sm:$0x3]
        %s233 = scalar_lea.vmem %s183, 2 [#allocation2]
        %v234 = vld [vmem:[%s233] ss:$4 sm:$0x3]
        %s235 = scalar_lea.vmem %s183, 3 [#allocation2]
        %v236 = vld [vmem:[%s235] ss:$4 sm:$0x3]
        %v237 = vmax.f32 %v230, %v232
        %v238 = vmax.f32 %v237, %v234
        %v239 = vmax.f32 %v238, %v236
        %v240 = vsub.f32 %v230, %v239
        %v241 = vmul.f32 %v240, 1.442695
        %v242 = vpow.pop %v241
        %v243 = vsub.f32 %v232, %v239
        %v244 = vmul.f32 %v243, 1.442695
        %v245 = vpow.pop %v244
        %v246 = vadd.f32 %v242, %v245
        %v247 = vsub.f32 %v234, %v239
        %v248 = vmul.f32 %v247, 1.442695
        %v249 = vpow.pop %v248
        %v250 = vadd.f32 %v246, %v249
        %v251 = vsub.f32 %v236, %v239
        %v252 = vmul.f32 %v251, 1.442695
        %v253 = vpow.pop %v252
        %v254 = vadd.f32 %v250, %v253
        %vm255 = vcmp.eq.s32.totalorder %v229, 1
        %v256 = vsel %vm255, %v232, %v230
        %vm257 = vcmp.eq.s32.totalorder %v229, 2
        %v258 = vsel %vm257, %v234, %v256
        %vm259 = vcmp.eq.s32.totalorder %v229, 3
        %v260 = vsel %vm259, %v236, %v258
        %v261 = vsub.f32 %v260, %v239
        %v262 = vlog2.pop %v254
        %v263 = vmul.f32 %v262, 0.6931472
        %v264 = vsub.f32 %v261, %v263
        %v265 = vmul.f32 %v264, 1.442695
        %v266 = vpow.pop %v265
        %v267 = vsub.f32 1.0, %v266
        %v268 = vmax.f32 %v267, 0.0
        %v269 = vmul.f32 %v268, %v268
        %v270 = vsub.f32 0.0, %v264
        %v271 = vmul.f32 %v269, %v270
        %v272 = vld [vmem:[%s217] sm:$0x3]
        %v273 = vadd.f32 %v272, %v271
        %v274 = vlaneseq
        %vm275 = vcmp.ge.s32.totalorder %v274, 0
        %vm276 = vcmp.lt.s32.totalorder %v274, 256
        %vm277 = vmand %vm275, %vm276
        %278 = vst.msk [vmem:[%s217] sm:$0x3] %vm277, %v273
        %s279 = sand.u32 %s98, 1
        %s280 = scalar_lea.sflag [#allocation4], %s279
        %s281 = sand.u32 %s98, 1
        %s282 = smul.addr %s281, 2
        %s283 = scalar_lea.vmem [#allocation7], %s282
        // Predicated region
        $region41: #{tpu_custom_call.1} parent=27 // pred_check
          %p284 = pneg %p108
        $region42: #{tpu_custom_call.1} parent=27 // pred_check_branch
          %286 = sbr.rel (%p284) target = $region44
        $region43: #{tpu_custom_call.1} parent=27 // pred_region
          %s288 = ssub.s32 32, 32
          %289 = vsyncadd %s280, %s288
          %s290 = smul.addr %s26, 2
          %s291 = smul.addr %s290, 16
          %s292 = scalar_lea.hbm %s2, %s291
          %s294 = sshll.u32 %s283, 4
          %s295 = int_to_ptr.vmem [resolvable:$true] %s294
          %297 = dma.vmem_to_hbm [thread:$0]  %s295, 32, %s292, %s280
        $region44: #{tpu_custom_call.1} parent=27 // pred_fallthru
          _
      $region28: #{tpu_custom_call.1} parent=5 // pred_fallthru
        _
      %p298 = scmp.le.s32.totalorder 2, %s17
      // Predicated region
      $region45: #{tpu_custom_call.1} parent=5 // pred_check
        %p299 = pneg %p298
      $region46: #{tpu_custom_call.1} parent=5 // pred_check_branch
        %301 = sbr.rel (%p299) target = $region48
      $region47: #{tpu_custom_call.1} parent=5 // pred_region
        %s302 = ssub.s32 %s17, 2
        // Predicated region
        $region49: #{tpu_custom_call.1} parent=47 // pred_check
          %p303 = pneg %p114
        $region50: #{tpu_custom_call.1} parent=47 // pred_check_branch
          %305 = sbr.rel (%p303) target = $region52
        $region51: #{tpu_custom_call.1} parent=47 // pred_region
          %s306 = sand.u32 %s99, 1
          %s307 = scalar_lea.sflag [#allocation4], %s306
          %s308 = sand.u32 %s99, 1
          %s309 = smul.addr %s308, 2
          %s310 = scalar_lea.vmem [#allocation7], %s309
          %311 = dma.done %s307, 32
        $region52: #{tpu_custom_call.1} parent=47 // pred_fallthru
          _
      $region48: #{tpu_custom_call.1} parent=5 // pred_fallthru
        _
    $region6: #{tpu_custom_call.1} parent=1 // loop_footer
      %s21 = sadd.s32 1, %s17
    $region7: #{tpu_custom_call.1} parent=1 // loop_footer_branch
      %16 = sbr.rel target = $region3
    $region8: #{tpu_custom_call.1} parent=1 // loop_exit
      _
    %312 = vsyncpa [#allocation3], 1
    %s313 = scalar_lea.sflag [#allocation3], 1
    %314 = vsyncpa %s313, 1
    %315 = vsyncpa [#allocation6], 1
    %s316 = scalar_lea.sflag [#allocation6], 1
    %317 = vsyncpa %s316, 1
    %318 = vsyncpa [#allocation4], 1
    %s319 = scalar_lea.sflag [#allocation4], 1
    %320 = vsyncpa %s319, 1

</llo_original>
